<compile_context>
chip_gen: v5e
topology: v5e:2x2
jax: 0.10.0
libtpu: 0.0.40
codegen_flags: <defaults>
</compile_context>

<pallas_src>
import functools

import jax
import jax.numpy as jnp
from jax.experimental import pallas as pl
from jax.experimental.pallas import tpu as pltpu

EMBED_DIM = 32
NUM_HEADS = 4   # kept for parity with the PyTorch module; cannot affect output
N_TOKENS = 8


def _linear_kernel(x_ref, wt_ref, b_ref, out_ref):
    """out = x @ W^T + b on one (tm, E) row tile.

    wt_ref already holds W^T (E_in, E_out): contraction dim on the RHS
    sublane axis is the MXU-native layout, so no transpose is emitted here.
    The MultiheadAttention output of the PyTorch module is discarded by its
    forward(), so it is intentionally not computed.
    """
    y = jnp.dot(x_ref[...], wt_ref[...], preferred_element_type=jnp.float32)
    out_ref[...] = (y + b_ref[...]).astype(out_ref.dtype)


def init_params(key, embed_dim):
    """Same parameter set as the PyTorch module (MHA params kept for parity,
    though they cannot influence the module's output)."""
    ks = jax.random.split(key, 6)
    scale = 0.05
    return {
        # nn.MultiheadAttention parameters (unused by the forward output).
        "in_proj_w": scale * jax.random.normal(ks[0], (3 * embed_dim, embed_dim), jnp.float32),
        "in_proj_b": scale * jax.random.normal(ks[1], (3 * embed_dim,), jnp.float32),
        "out_proj_w": scale * jax.random.normal(ks[2], (embed_dim, embed_dim), jnp.float32),
        "out_proj_b": scale * jax.random.normal(ks[3], (embed_dim,), jnp.float32),
        # nn.Linear parameters (these determine the output).
        "linear_w": scale * jax.random.normal(ks[4], (embed_dim, embed_dim), jnp.float32),
        "linear_b": scale * jax.random.normal(ks[5], (embed_dim,), jnp.float32),
    }


def prepare_kernel_params(params):
    """One-time repack (amortized to zero): W -> W^T (MXU-native RHS layout),
    bias -> 2-D row for clean VMEM layout."""
    return {
        "linear_wt": jnp.asarray(params["linear_w"]).T,                  # (E_in, E_out)
        "linear_b2d": jnp.asarray(params["linear_b"]).reshape(1, -1),    # (1, E)
    }


@functools.partial(jax.jit, static_argnames=("block_m",))
def transformer_layer(x, kparams, block_m=512):
    """Forward of TransformerLayer: the attention result is discarded by the
    module, so the output is Linear(x).

    Accepts x of shape (..., E); all leading dims are flattened into one M
    axis so a batch / stack of such problems runs in a single pallas_call
    (one grid over row tiles) rather than one launch per tiny (8, 32) matmul.
    """
    *lead, E = x.shape
    xm = x.reshape(-1, E)
    M = xm.shape[0]
    tm = min(block_m, M)          # largest row tile that exists; 8-row demo -> single step
    grid = (pl.cdiv(M, tm),)

    wt = kparams["linear_wt"]     # (E, E), pre-transposed
    b2 = kparams["linear_b2d"]    # (1, E)

    out = pl.pallas_call(
        _linear_kernel,
        out_shape=jax.ShapeDtypeStruct((M, E), x.dtype),
        grid=grid,
        in_specs=[
            pl.BlockSpec((tm, E), lambda i: (i, 0)),   # row tile of x
            pl.BlockSpec((E, E), lambda i: (0, 0)),    # weight, resident across steps
            pl.BlockSpec((1, E), lambda i: (0, 0)),    # bias, resident across steps
        ],
        out_specs=pl.BlockSpec((tm, E), lambda i: (i, 0)),
        # Write the result into the input slab's HBM buffer (no extra output
        # allocation; full benefit when the caller donates x).
        input_output_aliases={0: 0},
        compiler_params=pltpu.CompilerParams(
            # Row tiles are independent -> megacore sharding on v7x when M > tm.
            dimension_semantics=("parallel",),
        ),
    )(xm, wt, b2)
    return out.reshape(*lead, E)


if __name__ == "__main__":
    key = jax.random.PRNGKey(0)
    kx, kp = jax.random.split(key)
    x = jax.random.normal(kx, (N_TOKENS, EMBED_DIM), dtype=jnp.float32)
    params = init_params(kp, EMBED_DIM)
    kparams = prepare_kernel_params(params)   # one-time weight repack

    # Single module forward (N=8, E=32) — exactly the PyTorch semantics.
    out = jax.block_until_ready(transformer_layer(x, kparams))
    ref = x @ params["linear_w"].T + params["linear_b"]
    assert out.shape == (N_TOKENS, EMBED_DIM)
    assert jnp.allclose(out, ref, atol=1e-5, rtol=1e-5), "mismatch vs reference linear"

    # Amortization path: 16 independent (8, 32) inputs run as ONE pallas_call
    # (a single 128x32 row slab), not 16 launches.
    xs = jax.random.normal(jax.random.PRNGKey(1), (16, N_TOKENS, EMBED_DIM), jnp.float32)
    outs = jax.block_until_ready(transformer_layer(xs, kparams))
    refs = xs @ params["linear_w"].T + params["linear_b"]
    assert jnp.allclose(outs, refs, atol=1e-5, rtol=1e-5), "mismatch vs batched reference"

    print("KERNEL_OK")
</pallas_src>

<mosaic_0001>
module attributes {stable_mosaic.version = 11 : i64} {
  func.func @_linear_kernel(%arg0: i32, %arg1: memref<8x32xf32, #tpu.memory_space<vmem>>, %arg2: memref<32x32xf32, #tpu.memory_space<vmem>>, %arg3: memref<1x32xf32, #tpu.memory_space<vmem>>, %arg4: memref<8x32xf32, #tpu.memory_space<vmem>>) attributes {dimension_semantics = [#tpu.dimension_semantics<parallel>], iteration_bounds = array<i64: 1>, scalar_prefetch = 0 : i64, scratch_operands = 0 : i64, tpu.core_type = #tpu.core_type<tc>, window_params = [{transform_indices = @transform_0, window_bounds = array<i64: 8, 32>}, {pipeline_mode = #tpu.pipeline_mode<synchronous>, transform_indices = @transform_1, window_bounds = array<i64: 32, 32>}, {pipeline_mode = #tpu.pipeline_mode<synchronous>, transform_indices = @transform_2, window_bounds = array<i64: 1, 32>}, {transform_indices = @transform_3, window_bounds = array<i64: 8, 32>}]} {
    %c0 = arith.constant 0 : index
    %c0_0 = arith.constant 0 : index
    %0 = vector.load %arg1[%c0, %c0_0] : memref<8x32xf32, #tpu.memory_space<vmem>>, vector<8x32xf32>
    %c0_1 = arith.constant 0 : index
    %c0_2 = arith.constant 0 : index
    %1 = vector.load %arg2[%c0_1, %c0_2] : memref<32x32xf32, #tpu.memory_space<vmem>>, vector<32x32xf32>
    %cst = arith.constant dense<0.000000e+00> : vector<8x32xf32>
    %2 = tpu.matmul %0, %1, %cst {dimension_numbers = #tpu.dot_dimension_numbers<[1], [0], [0], [1], [0, 0, 1, 1], [], []>} : vector<8x32xf32>, vector<32x32xf32>, vector<8x32xf32> -> vector<8x32xf32>
    %c0_3 = arith.constant 0 : index
    %c0_4 = arith.constant 0 : index
    %3 = vector.load %arg3[%c0_3, %c0_4] : memref<1x32xf32, #tpu.memory_space<vmem>>, vector<1x32xf32>
    %4 = vector.broadcast %3 : vector<1x32xf32> to vector<8x32xf32>
    %5 = arith.addf %2, %4 : vector<8x32xf32>
    %c0_5 = arith.constant 0 : index
    %c0_6 = arith.constant 0 : index
    %6 = vector.load %arg4[%c0_5, %c0_6] : memref<8x32xf32, #tpu.memory_space<vmem>>, vector<8x32xf32>
    tpu.vector_store %arg4[%c0_5, %c0_6], %5 {strides = array<i32>} : memref<8x32xf32, #tpu.memory_space<vmem>>, vector<8x32xf32>,
    return
  }
  func.func @transform_0(%arg0: i32) -> (i32, i32) {
    %c0_i32 = arith.constant 0 : i32
    %c0_i32_0 = arith.constant 0 : i32
    return %arg0, %c0_i32 : i32, i32
  }
  func.func @transform_1(%arg0: i32) -> (i32, i32) {
    %c0_i32 = arith.constant 0 : i32
    %c0_i32_0 = arith.constant 0 : i32
    %c0_i32_1 = arith.constant 0 : i32
    return %c0_i32, %c0_i32_0 : i32, i32
  }
  func.func @transform_2(%arg0: i32) -> (i32, i32) {
    %c0_i32 = arith.constant 0 : i32
    %c0_i32_0 = arith.constant 0 : i32
    %c0_i32_1 = arith.constant 0 : i32
    return %c0_i32, %c0_i32_0 : i32, i32
  }
  func.func @transform_3(%arg0: i32) -> (i32, i32) {
    %c0_i32 = arith.constant 0 : i32
    %c0_i32_0 = arith.constant 0 : i32
    return %arg0, %c0_i32 : i32, i32
  }
}

</mosaic_0001>

<llo_original>
// kernel: transformer_layer.1
$region0: #{transformer_layer.1}
  #allocation0 [shape = 'u32[]', space=smem, size = 0x4, offset = 0x4, fixed_abs, tag = 'smem constant byte address 0x4 - core index']
  #allocation1 [shape = 'u32[72,128]{1,0:T(1,128)}', space=vmem, size = 0x9000, scoped, tag = 'internal scratch']
  %s0 = inlined_call_operand.hbm [shape: f32[8,32], index: 0, kind: input, shape index: {}, may-alias: {0,3}]
  %s1 = inlined_call_operand.hbm [shape: f32[32,32], index: 1, kind: input, shape index: {}]
  %s2 = inlined_call_operand.vmem [shape: f32[1,32], index: 2, kind: input, shape index: {}]
  %s3 = inlined_call_operand.hbm [shape: f32[8,32], index: 3, kind: output, shape index: {}, may-alias: {0,3}]
  %s4 = sld [smem:[#allocation0]]
  $region30: #{transformer_layer.1} parent=0
    _
  %s6 = ssub.s32 1, %s4
  %s7 = scalar_select 0, %s6, %s4
  $region1: #{transformer_layer.1} parent=0
    #allocation2 [shape = 'u8[4096]{0}', space=vmem, size = 0x1000, scoped, tag = 'input window, operand 0, single buffered']
    #allocation3 [shape = 's32[1]{0}', space=sflag, size = 0x4, scoped, tag = 'scoped memory for transformer_layer.1']
    #allocation4 [shape = 's32[1]{0}', space=sflag, size = 0x4, scoped, tag = 'scoped memory for transformer_layer.1']
    #allocation5 [shape = 'u8[16384]{0}', space=vmem, size = 0x4000, scoped, tag = 'input window, operand 1, single buffered']
    #allocation6 [shape = 's32[1]{0}', space=sflag, size = 0x4, scoped, tag = 'scoped memory for transformer_layer.1']
    #allocation7 [shape = 'u8[4096]{0}', space=vmem, size = 0x1000, scoped, tag = 'output window, operand 0, single buffered']
    %8 = vsyncpa [#allocation3], 0
    %9 = vsyncpa [#allocation6], 0
    %10 = vsyncpa [#allocation4], 0
    // Predicated region
    $region2: #{transformer_layer.1} parent=1 // pred_check
      _
    $region3: #{transformer_layer.1} parent=1 // pred_check_branch
      %12 = sbr.rel (0) target = $region5
    $region4: #{transformer_layer.1} parent=1 // pred_region
      %14 = vsyncadd [#allocation3], 0
      %s16 = sshll.u32 %s0, 4
      %s17 = int_to_ptr.hbm [resolvable:$true] %s16
      %s18 = sshll.u32 [#allocation2], 4
      %s19 = int_to_ptr.vmem [resolvable:$true] %s18
      %21 = dma.hbm_to_vmem [thread:$0]  %s17, 128, %s19, [#allocation3]
    $region5: #{transformer_layer.1} parent=1 // pred_fallthru
      _
    // Predicated region
    $region6: #{transformer_layer.1} parent=1 // pred_check
      _
    $region7: #{transformer_layer.1} parent=1 // pred_check_branch
      %23 = sbr.rel (0) target = $region9
    $region8: #{transformer_layer.1} parent=1 // pred_region
      %25 = vsyncadd [#allocation6], 0
      %s26 = sshll.u32 %s1, 4
      %s27 = int_to_ptr.hbm [resolvable:$true] %s26
      %s28 = sshll.u32 [#allocation5], 4
      %s29 = int_to_ptr.vmem [resolvable:$true] %s28
      %34 = dma.hbm_to_vmem [thread:$0]  %s27, 512, %s29, [#allocation6], 128, 128, 8
    $region9: #{transformer_layer.1} parent=1 // pred_fallthru
      _
    // Predicated region
    $region10: #{transformer_layer.1} parent=1 // pred_check
      _
    $region11: #{transformer_layer.1} parent=1 // pred_check_branch
      %36 = sbr.rel (0) target = $region13
    $region12: #{transformer_layer.1} parent=1 // pred_region
      _
    $region13: #{transformer_layer.1} parent=1 // pred_fallthru
      _
    // Predicated region
    $region14: #{transformer_layer.1} parent=1 // pred_check
      _
    $region15: #{transformer_layer.1} parent=1 // pred_check_branch
      %38 = sbr.rel (0) target = $region17
    $region16: #{transformer_layer.1} parent=1 // pred_region
      %40 = dma.done [#allocation3], 128
    $region17: #{transformer_layer.1} parent=1 // pred_fallthru
      _
    // Predicated region
    $region18: #{transformer_layer.1} parent=1 // pred_check
      _
    $region19: #{transformer_layer.1} parent=1 // pred_check_branch
      %42 = sbr.rel (0) target = $region21
    $region20: #{transformer_layer.1} parent=1 // pred_region
      %44 = dma.done [#allocation6], 512
    $region21: #{transformer_layer.1} parent=1 // pred_fallthru
      _
    %v45 = vld [vmem:[#allocation2] sm:$0xff]
    %v46 = vld [vmem:[#allocation5] sm:$0xff]
    %v47 = vld [vmem:[#allocation5 + $0x8] sm:$0xff]
    %v48 = vld [vmem:[#allocation5 + $0x10] sm:$0xff]
    %v49 = vld [vmem:[#allocation5 + $0x18] sm:$0xff]
    %v50 = vld [vmem:[%s2] sm:$0x1]
    %v52 = vperm.slane %v50, 0
    %vm54 = vcmask 261120
    %v56 = vsel %vm54, %v45, 0
    %58 = vmatpush.msra.mxu0 0.0
    %59 = vmatpush.msra.mxu0 0.0
    %60 = vmatpush.msra.mxu0 0.0
    %61 = vmatpush.msra.mxu0 0.0
    %62 = vmatpush.msra.mxu0 0.0
    %63 = vmatpush.msra.mxu0 0.0
    %64 = vmatpush.msra.mxu0 0.0
    %65 = vmatpush.msra.mxu0 0.0
    %66 = vmatpush.msra.mxu0 0.0
    %67 = vmatpush.msra.mxu0 0.0
    %68 = vmatpush.msra.mxu0 0.0
    %69 = vmatpush.msra.mxu0 0.0
    %70 = vmatpush.msra.mxu0 %v49
    %71 = vmatpush.msra.mxu0 %v48
    %72 = vmatpush.msra.mxu0 %v47
    %73 = vmatpush.msra.mxu0 %v46
    %74 = vmatmul.f32.gmra.mxu0 %v56
    %v75 = vpop.f32.mrf.mxu0
    %v76 = vadd.f32 %v52, %v75
    %77 = vdwg.mxu0
    %78 = vst.msk [vmem:[#allocation7] sm:$0xff] %vm54, %v76
    // Predicated region
    $region22: #{transformer_layer.1} parent=1 // pred_check
      _
    $region23: #{transformer_layer.1} parent=1 // pred_check_branch
      %80 = sbr.rel (0) target = $region25
    $region24: #{transformer_layer.1} parent=1 // pred_region
      %82 = vsyncadd [#allocation4], 0
      %s84 = sshll.u32 [#allocation7], 4
      %s85 = int_to_ptr.vmem [resolvable:$true] %s84
      %s86 = sshll.u32 %s3, 4
      %s87 = int_to_ptr.hbm [resolvable:$true] %s86
      %89 = dma.vmem_to_hbm [thread:$0]  %s85, 128, %s87, [#allocation4]
    $region25: #{transformer_layer.1} parent=1 // pred_fallthru
      _
    // Predicated region
    $region26: #{transformer_layer.1} parent=1 // pred_check
      _
    $region27: #{transformer_layer.1} parent=1 // pred_check_branch
      %91 = sbr.rel (0) target = $region29
    $region28: #{transformer_layer.1} parent=1 // pred_region
      %93 = dma.done [#allocation4], 128
    $region29: #{transformer_layer.1} parent=1 // pred_fallthru
      _
    %94 = vsyncpa [#allocation3], 1
    %95 = vsyncpa [#allocation6], 1
    %96 = vsyncpa [#allocation4], 1

</llo_original>
